<compile_context>
chip_gen: v7x
topology: tpu7x:2x2x1
jax: 0.10.0
libtpu: 0.0.40
codegen_flags: <defaults>
</compile_context>

<pallas_src>
import functools

import jax
import jax.numpy as jnp
from jax import lax
from jax.experimental import pallas as pl
from jax.experimental.pallas import tpu as pltpu


# ---------------------------------------------------------------------------
# Small helpers (block sizing, device info)
# ---------------------------------------------------------------------------
def _pad_to(n, m):
    return ((n + m - 1) // m) * m


def _divisors(n):
    out = set()
    d = 1
    while d * d <= n:
        if n % d == 0:
            out.add(d)
            out.add(n // d)
        d += 1
    return sorted(out)


def _dim_candidates(n, align):
    """Divisors of n that are multiples of `align`, plus n itself (full dim)."""
    cands = {n}
    for d in _divisors(n):
        if d % align == 0:
            cands.add(d)
    return sorted(cands)


def _vmem_capacity_bytes():
    """Physical VMEM per TensorCore; conservative 64 MiB (v7x) fallback."""
    try:
        info = pltpu.get_tpu_info()
        for name in ("vmem_capacity_bytes", "vmem_size_bytes", "vmem_bytes"):
            v = getattr(info, name, None)
            if v:
                return int(v)
    except Exception:
        pass
    return 64 * 1024 * 1024


def _choose_apply_block(rows, cols, budget_bytes):
    """(rb, cb) for a flat (rows, cols) f32 array: rb multiple of 8 (or full),
    cb multiple of 128 (or full); maximize block bytes <= budget, preferring
    lane-dense (large cb) blocks."""
    r_cands = _dim_candidates(rows, 8)
    c_cands = _dim_candidates(cols, 128)
    best = None
    for cb in c_cands:
        for rb in r_cands:
            if rb * cb * 4 <= budget_bytes:
                key = (rb * cb, cb)
                if best is None or key > best[0]:
                    best = (key, (rb, cb))
    if best is None:                 # even the smallest legal tile is over budget
        return min(r_cands), min(c_cands)
    return best[1]


def _choose_stats_block(n, c, s, budget_bytes):
    """(nb, s_tile) for (nb, c, s_tile) f32 blocks; accounts for the sublane
    padding of c (c < 8 pads to 8 in VMEM)."""
    c_pad = _pad_to(c, 8)
    s_cands = _dim_candidates(s, 128)
    s_ok = [d for d in s_cands if c_pad * d * 4 <= budget_bytes]
    s_tile = max(s_ok) if s_ok else min(s_cands)
    per_row = c_pad * s_tile * 4
    nb_cap = max(1, budget_bytes // per_row)
    nb = max(d for d in _divisors(n) if d <= nb_cap)
    return nb, s_tile


# ---------------------------------------------------------------------------
# Kernels
# ---------------------------------------------------------------------------
def _stats_kernel(x_ref, sum_ref, ssq_ref):
    """Accumulate per-channel sum and sum-of-squares.

    x_ref:   (nb, C, s_tile) f32 input block.
    sum_ref: (1, C, 1) f32 partial accumulator (one per leading parallel index).
    ssq_ref: (1, C, 1) f32 partial accumulator.
    """
    first = (pl.program_id(1) == 0) & (pl.program_id(2) == 0)

    @pl.when(first)
    def _():
        sum_ref[...] = jnp.zeros_like(sum_ref)
        ssq_ref[...] = jnp.zeros_like(ssq_ref)

    xb = x_ref[...]                                   # (nb, C, s_tile)
    xs = jnp.sum(xb, axis=0)                          # (C, s_tile)  VPU adds
    xss = jnp.sum(xb * xb, axis=0)                    # (C, s_tile)
    sum_ref[...] += jnp.sum(xs, axis=-1, keepdims=True)[None]    # (1, C, 1)
    ssq_ref[...] += jnp.sum(xss, axis=-1, keepdims=True)[None]   # (1, C, 1)


def _apply_kernel(x_ref, scale_ref, shift_ref, o_ref):
    """y = scale[row] * x + shift[row] on a flat (rows, cols) tile.

    x_ref / o_ref: (rb, sb) f32; scale_ref / shift_ref: (rb, 1) f32 (already
    fold p[t], gamma, beta and the batch statistics)."""
    o_ref[...] = x_ref[...] * scale_ref[...] + shift_ref[...]


def _fused_kernel(x_ref, gamma_ref, beta_ref, pn_ref, o_ref, *, count, eps):
    """Whole tensor resident in VMEM: stats + affine + temporal scale in one
    pass (x read from HBM exactly once, y written once)."""
    xb = x_ref[...]                                   # (N, C, S)
    inv_cnt = jnp.float32(1.0 / count)
    xs = jnp.sum(xb, axis=0)                          # (C, S)
    xss = jnp.sum(xb * xb, axis=0)                    # (C, S)
    mean = jnp.sum(xs, axis=-1, keepdims=True)[None] * inv_cnt     # (1, C, 1)
    msq = jnp.sum(xss, axis=-1, keepdims=True)[None] * inv_cnt     # (1, C, 1)
    var = jnp.maximum(msq - mean * mean, 0.0)
    inv_std = lax.rsqrt(var + jnp.float32(eps))
    g = gamma_ref[...][None] * inv_std                # (1, C, 1)
    b = beta_ref[...][None] - g * mean                # (1, C, 1)
    pn = pn_ref[...]                                  # (N, C, 1)
    o_ref[...] = xb * (g * pn) + b * pn


# ---------------------------------------------------------------------------
# Wrapper
# ---------------------------------------------------------------------------
def tebn_forward(x, gamma, beta, p, *, eps=1e-5, allow_fused=True,
                 max_block_bytes=None):
    """TEBN forward.

    x:     [B, T, C, H, W] float32
    gamma: [C] float32   (bn.weight)
    beta:  [C] float32   (bn.bias)
    p:     [T] float32   (per-timestep scale; the module hardcodes T = 4)
    """
    B, T, C, H, W = x.shape
    assert p.shape == (T,)
    S = H * W
    N = B * T                 # BN reduction rows (per channel)
    R = B * T * C             # flat rows for the apply pass
    count = float(N * S)

    x = x.astype(jnp.float32)
    gamma = gamma.astype(jnp.float32)
    beta = beta.astype(jnp.float32)
    p = p.astype(jnp.float32)

    # ---- generation-aware VMEM budgets ------------------------------------
    vmem_cap = _vmem_capacity_bytes()
    vmem_limit = (vmem_cap * 3) // 4                    # explicit scoped limit
    apply_block_budget = max(4 << 20, vmem_limit // 8)  # x + y, double-buffered
    stats_block_budget = max(4 << 20, vmem_limit // 4)  # x only, double-buffered
    if max_block_bytes is not None:
        apply_block_budget = min(apply_block_budget, max_block_bytes)
        stats_block_budget = min(stats_block_budget, max_block_bytes)

    x3 = x.reshape(N, C, S)          # free contiguous reshape

    # ---- fused single-read fast path ---------------------------------------
    padded_bytes = N * _pad_to(C, 8) * _pad_to(S, 128) * 4
    fused_budget = int(vmem_cap * 0.55)
    if allow_fused and (2 * padded_bytes + (2 << 20)) <= fused_budget:
        gamma2 = gamma.reshape(C, 1)
        beta2 = beta.reshape(C, 1)
        pn = jnp.broadcast_to(p[None, :, None], (B, T, C)).reshape(N, C, 1)
        y3 = pl.pallas_call(
            functools.partial(_fused_kernel, count=count, eps=eps),
            out_shape=jax.ShapeDtypeStruct((N, C, S), jnp.float32),
            in_specs=[pl.BlockSpec(memory_space=pltpu.MemorySpace.VMEM)] * 4,
            out_specs=pl.BlockSpec(memory_space=pltpu.MemorySpace.VMEM),
            compiler_params=pltpu.CompilerParams(vmem_limit_bytes=vmem_limit),
        )(x3, gamma2, beta2, pn)
        return y3.reshape(B, T, C, H, W)

    # ---- Pass 1: per-channel sum / sum-of-squares (Pallas reduction) -------
    nb, s_tile = _choose_stats_block(N, C, S, stats_block_budget)
    n_blocks = N // nb
    s_blocks = S // s_tile
    # Split the serial reduction across the two TensorCores of v7x (harmless
    # on single-TC chips): leading "parallel" axis, partial sums per slice.
    P = 2 if (n_blocks % 2 == 0 and n_blocks >= 2) else 1
    n_inner = n_blocks // P

    psum, pssq = pl.pallas_call(
        _stats_kernel,
        out_shape=(jax.ShapeDtypeStruct((P, C, 1), jnp.float32),
                   jax.ShapeDtypeStruct((P, C, 1), jnp.float32)),
        grid_spec=pltpu.PrefetchScalarGridSpec(
            num_scalar_prefetch=0,
            grid=(P, n_inner, s_blocks),
            in_specs=[pl.BlockSpec(
                (nb, C, s_tile),
                lambda pi, i, j: (pi * n_inner + i, 0, j))],
            out_specs=[pl.BlockSpec((1, C, 1), lambda pi, i, j: (pi, 0, 0)),
                       pl.BlockSpec((1, C, 1), lambda pi, i, j: (pi, 0, 0))],
        ),
        compiler_params=pltpu.CompilerParams(
            dimension_semantics=("parallel", "arbitrary", "arbitrary"),
            vmem_limit_bytes=vmem_limit),
    )(x3)

    # ---- tiny per-(t, c) / per-row math (plain JAX, negligible) ------------
    sums = jnp.sum(psum, axis=0).reshape(C)
    ssqs = jnp.sum(pssq, axis=0).reshape(C)
    cnt = jnp.float32(count)
    mean = sums / cnt
    # TODO(synk): E[x^2] - mean^2 can lose precision when |mean| >> std; a
    # shifted two-pass accumulation would be more robust but costs another
    # full HBM read on this bandwidth-bound op.
    var = jnp.maximum(ssqs / cnt - mean * mean, 0.0)     # biased var (BN train)
    inv_std = lax.rsqrt(var + jnp.float32(eps))
    g = gamma * inv_std                                  # (C,)
    scale_tc = p[:, None] * g[None, :]                   # (T, C)
    shift_tc = p[:, None] * (beta[None, :] - g[None, :] * mean[None, :])
    scale_row = jnp.broadcast_to(scale_tc[None], (B, T, C)).reshape(R, 1)
    shift_row = jnp.broadcast_to(shift_tc[None], (B, T, C)).reshape(R, 1)

    # ---- Pass 2: flat (R, S) elementwise affine (Pallas) -------------------
    x2 = x.reshape(R, S)             # free contiguous reshape
    rb, sb = _choose_apply_block(R, S, apply_block_budget)

    y2 = pl.pallas_call(
        _apply_kernel,
        out_shape=jax.ShapeDtypeStruct((R, S), jnp.float32),
        grid_spec=pltpu.PrefetchScalarGridSpec(
            num_scalar_prefetch=0,
            grid=(R // rb, S // sb),
            in_specs=[
                pl.BlockSpec((rb, sb), lambda i, j: (i, j)),
                pl.BlockSpec((rb, 1), lambda i, j: (i, 0)),   # re-DMA only on i
                pl.BlockSpec((rb, 1), lambda i, j: (i, 0)),
            ],
            out_specs=pl.BlockSpec((rb, sb), lambda i, j: (i, j)),
        ),
        compiler_params=pltpu.CompilerParams(
            dimension_semantics=("parallel", "parallel"),
            vmem_limit_bytes=vmem_limit),
    )(x2, scale_row, shift_row)

    return y2.reshape(B, T, C, H, W)


# ---------------------------------------------------------------------------
# Pure-JAX reference mirroring the PyTorch module (training-mode BN forward)
# ---------------------------------------------------------------------------
def tebn_reference(x, gamma, beta, p, eps=1e-5):
    mean = jnp.mean(x, axis=(0, 1, 3, 4))
    var = jnp.var(x, axis=(0, 1, 3, 4))          # biased, matches BN training
    mean_b = mean[None, None, :, None, None]
    std_b = jnp.sqrt(var + eps)[None, None, :, None, None]
    y = gamma[None, None, :, None, None] * (x - mean_b) / std_b
    y = y + beta[None, None, :, None, None]
    y = y * p[None, :, None, None, None]
    return y


if __name__ == "__main__":
    key = jax.random.PRNGKey(0)
    k1, k2, k3, k4 = jax.random.split(key, 4)

    # Module hardcodes T = 4 (p has shape (4,1,1,1,1)); C = num_features.
    B, T, C, H, W = 2, 4, 4, 16, 16
    x = 1.5 * jax.random.normal(k1, (B, T, C, H, W), dtype=jnp.float32) + 0.3
    gamma = 1.0 + 0.1 * jax.random.normal(k2, (C,), dtype=jnp.float32)
    beta = 0.1 * jax.random.normal(k3, (C,), dtype=jnp.float32)
    p = 1.0 + 0.1 * jax.random.normal(k4, (T,), dtype=jnp.float32)

    ref = tebn_reference(x, gamma, beta, p)

    # Default dispatch (small tensor -> fused single-read fast path).
    out_fused = jax.block_until_ready(tebn_forward(x, gamma, beta, p))
    # Force the tiled two-pass path with tiny blocks to exercise multi-step
    # grids (stats grid (2,2,1), apply grid (2,1)) on these small shapes.
    out_tiled = jax.block_until_ready(
        tebn_forward(x, gamma, beta, p, allow_fused=False,
                     max_block_bytes=16 * 1024))

    for out in (out_fused, out_tiled):
        assert out.shape == (B, T, C, H, W)
        assert out.dtype == jnp.float32
        max_err = float(jnp.max(jnp.abs(out - ref)))
        assert jnp.allclose(out, ref, atol=1e-4, rtol=1e-4), f"max err {max_err}"

    print("KERNEL_OK")
</pallas_src>

<mosaic_0001>
module attributes {stable_mosaic.version = 11 : i64} {
  func.func @_fused_kernel(%arg0: memref<8x4x256xf32, #tpu.memory_space<vmem>>, %arg1: memref<4x1xf32, #tpu.memory_space<vmem>>, %arg2: memref<4x1xf32, #tpu.memory_space<vmem>>, %arg3: memref<8x4x1xf32, #tpu.memory_space<vmem>>, %arg4: memref<8x4x256xf32, #tpu.memory_space<vmem>>) attributes {dimension_semantics = [], scalar_prefetch = 0 : i64, scratch_operands = 0 : i64, tpu.core_type = #tpu.core_type<tc>} {
    %c0 = arith.constant 0 : index
    %c0_0 = arith.constant 0 : index
    %c0_1 = arith.constant 0 : index
    %0 = vector.load %arg0[%c0, %c0_0, %c0_1] : memref<8x4x256xf32, #tpu.memory_space<vmem>>, vector<8x4x256xf32>
    %cst = arith.constant dense<0.000000e+00> : vector<4x256xf32>
    %1 = vector.multi_reduction <add>, %0, %cst [0] : vector<8x4x256xf32> to vector<4x256xf32>
    %2 = arith.mulf %0, %0 : vector<8x4x256xf32>
    %cst_2 = arith.constant dense<0.000000e+00> : vector<4x256xf32>
    %3 = vector.multi_reduction <add>, %2, %cst_2 [0] : vector<8x4x256xf32> to vector<4x256xf32>
    %cst_3 = arith.constant dense<0.000000e+00> : vector<4xf32>
    %4 = vector.multi_reduction <add>, %1, %cst_3 [1] : vector<4x256xf32> to vector<4xf32>
    %5 = vector.shape_cast %4 : vector<4xf32> to vector<4x1xf32>
    %6 = vector.shape_cast %5 : vector<4x1xf32> to vector<1x4x1xf32>
    %cst_4 = arith.constant 4.8828125E-4 : f32
    %7 = vector.broadcast %cst_4 : f32 to vector<1x4x1xf32>
    %8 = arith.mulf %6, %7 : vector<1x4x1xf32>
    %cst_5 = arith.constant dense<0.000000e+00> : vector<4xf32>
    %9 = vector.multi_reduction <add>, %3, %cst_5 [1] : vector<4x256xf32> to vector<4xf32>
    %10 = vector.shape_cast %9 : vector<4xf32> to vector<4x1xf32>
    %11 = vector.shape_cast %10 : vector<4x1xf32> to vector<1x4x1xf32>
    %cst_6 = arith.constant 4.8828125E-4 : f32
    %12 = vector.broadcast %cst_6 : f32 to vector<1x4x1xf32>
    %13 = arith.mulf %11, %12 : vector<1x4x1xf32>
    %14 = arith.mulf %8, %8 : vector<1x4x1xf32>
    %15 = arith.subf %13, %14 : vector<1x4x1xf32>
    %cst_7 = arith.constant 0.000000e+00 : f32
    %16 = vector.broadcast %cst_7 : f32 to vector<1x4x1xf32>
    %17 = arith.maximumf %15, %16 : vector<1x4x1xf32>
    %cst_8 = arith.constant 9.99999974E-6 : f32
    %18 = vector.broadcast %cst_8 : f32 to vector<1x4x1xf32>
    %19 = arith.addf %17, %18 : vector<1x4x1xf32>
    %20 = math.rsqrt %19 : vector<1x4x1xf32>
    %c0_9 = arith.constant 0 : index
    %c0_10 = arith.constant 0 : index
    %21 = vector.load %arg1[%c0_9, %c0_10] : memref<4x1xf32, #tpu.memory_space<vmem>>, vector<4x1xf32>
    %22 = vector.shape_cast %21 : vector<4x1xf32> to vector<1x4x1xf32>
    %23 = arith.mulf %22, %20 : vector<1x4x1xf32>
    %c0_11 = arith.constant 0 : index
    %c0_12 = arith.constant 0 : index
    %24 = vector.load %arg2[%c0_11, %c0_12] : memref<4x1xf32, #tpu.memory_space<vmem>>, vector<4x1xf32>
    %25 = vector.shape_cast %24 : vector<4x1xf32> to vector<1x4x1xf32>
    %26 = arith.mulf %23, %8 : vector<1x4x1xf32>
    %27 = arith.subf %25, %26 : vector<1x4x1xf32>
    %c0_13 = arith.constant 0 : index
    %c0_14 = arith.constant 0 : index
    %c0_15 = arith.constant 0 : index
    %28 = vector.load %arg3[%c0_13, %c0_14, %c0_15] : memref<8x4x1xf32, #tpu.memory_space<vmem>>, vector<8x4x1xf32>
    %29 = vector.broadcast %23 : vector<1x4x1xf32> to vector<8x4x1xf32>
    %30 = arith.mulf %29, %28 : vector<8x4x1xf32>
    %31 = vector.broadcast %30 : vector<8x4x1xf32> to vector<8x4x256xf32>
    %32 = arith.mulf %0, %31 : vector<8x4x256xf32>
    %33 = vector.broadcast %27 : vector<1x4x1xf32> to vector<8x4x1xf32>
    %34 = arith.mulf %33, %28 : vector<8x4x1xf32>
    %35 = vector.broadcast %34 : vector<8x4x1xf32> to vector<8x4x256xf32>
    %36 = arith.addf %32, %35 : vector<8x4x256xf32>
    %c0_16 = arith.constant 0 : index
    %c0_17 = arith.constant 0 : index
    %c0_18 = arith.constant 0 : index
    %37 = vector.load %arg4[%c0_16, %c0_17, %c0_18] : memref<8x4x256xf32, #tpu.memory_space<vmem>>, vector<8x4x256xf32>
    tpu.vector_store %arg4[%c0_16, %c0_17, %c0_18], %36 {strides = array<i32>} : memref<8x4x256xf32, #tpu.memory_space<vmem>>, vector<8x4x256xf32>,
    return
  }
}

</mosaic_0001>

<llo_original>
// kernel: tpu_custom_call.1
$region0: #{tpu_custom_call.1}
  #allocation0 [shape = 'u32[]', space=smem, size = 0x4, offset = 0x4, fixed_abs, tag = 'smem constant byte address 0x4 - core index']
  #allocation1 [shape = 'u32[144,128]{1,0:T(1,128)}', space=vmem, size = 0x12000, scoped, tag = 'internal scratch']
  %s0 = inlined_call_operand.hbm [shape: f32[8,4,256], index: 0, kind: input, shape index: {}]
  %s1 = inlined_call_operand.vmem [shape: f32[4,1], index: 1, kind: input, shape index: {}]
  %s2 = inlined_call_operand.vmem [shape: f32[4,1], index: 2, kind: input, shape index: {}]
  %s3 = inlined_call_operand.vmem [shape: f32[8,4,1], index: 3, kind: input, shape index: {}]
  %s4 = inlined_call_operand.hbm [shape: f32[8,4,256], index: 4, kind: output, shape index: {}]
  %s5 = sld [smem:[#allocation0]]
  $region30: #{tpu_custom_call.1} parent=0
    _
  %s7 = ssub.s32 1, %s5
  %s8 = scalar_select 0, %s7, %s5
  $region1: #{tpu_custom_call.1} parent=0
    #allocation2 [shape = 'u8[32768]{0}', space=vmem, size = 0x8000, scoped, tag = 'input window, operand 0, single buffered']
    #allocation3 [shape = 's32[1]{0}', space=sflag, size = 0x4, scoped, tag = 'scoped memory for tpu_custom_call.1']
    #allocation4 [shape = 's32[1]{0}', space=sflag, size = 0x4, scoped, tag = 'scoped memory for tpu_custom_call.1']
    #allocation5 [shape = 'u8[32768]{0}', space=vmem, size = 0x8000, scoped, tag = 'output window, operand 0, single buffered']
    %9 = vsyncpa [#allocation3], 0
    %10 = vsyncpa [#allocation4], 0
    // Predicated region
    $region2: #{tpu_custom_call.1} parent=1 // pred_check
      _
    $region3: #{tpu_custom_call.1} parent=1 // pred_check_branch
      %12 = sbr.rel (0) target = $region5
    $region4: #{tpu_custom_call.1} parent=1 // pred_region
      %s14 = ssub.s32 1024, 1024
      %15 = vsyncadd [#allocation3], %s14
      %s16 = sshll.u32 [#allocation2], 4
      %s17 = int_to_ptr.vmem [resolvable:$true] %s16
      %22 = dma.hbm_to_vmem [thread:$0]  %s0, 1024, %s17, [#allocation3], 128, 128, 8
    $region5: #{tpu_custom_call.1} parent=1 // pred_fallthru
      _
    // Predicated region
    $region6: #{tpu_custom_call.1} parent=1 // pred_check
      _
    $region7: #{tpu_custom_call.1} parent=1 // pred_check_branch
      %24 = sbr.rel (0) target = $region9
    $region8: #{tpu_custom_call.1} parent=1 // pred_region
      _
    $region9: #{tpu_custom_call.1} parent=1 // pred_fallthru
      _
    // Predicated region
    $region10: #{tpu_custom_call.1} parent=1 // pred_check
      _
    $region11: #{tpu_custom_call.1} parent=1 // pred_check_branch
      %26 = sbr.rel (0) target = $region13
    $region12: #{tpu_custom_call.1} parent=1 // pred_region
      _
    $region13: #{tpu_custom_call.1} parent=1 // pred_fallthru
      _
    // Predicated region
    $region14: #{tpu_custom_call.1} parent=1 // pred_check
      _
    $region15: #{tpu_custom_call.1} parent=1 // pred_check_branch
      %28 = sbr.rel (0) target = $region17
    $region16: #{tpu_custom_call.1} parent=1 // pred_region
      _
    $region17: #{tpu_custom_call.1} parent=1 // pred_fallthru
      _
    // Predicated region
    $region18: #{tpu_custom_call.1} parent=1 // pred_check
      _
    $region19: #{tpu_custom_call.1} parent=1 // pred_check_branch
      %30 = sbr.rel (0) target = $region21
    $region20: #{tpu_custom_call.1} parent=1 // pred_region
      %31 = dma.done [#allocation3], 1024
    $region21: #{tpu_custom_call.1} parent=1 // pred_fallthru
      _
    %v32 = vld [vmem:[#allocation2] sm:$0xff]
    %v33 = vld [vmem:[#allocation2 + $0x8] sm:$0xff]
    %v34 = vld [vmem:[#allocation2 + $0x10] sm:$0xff]
    %v35 = vld [vmem:[#allocation2 + $0x18] sm:$0xff]
    %v36 = vld [vmem:[#allocation2 + $0x20] sm:$0xff]
    %v37 = vld [vmem:[#allocation2 + $0x28] sm:$0xff]
    %v38 = vld [vmem:[#allocation2 + $0x30] sm:$0xff]
    %v39 = vld [vmem:[#allocation2 + $0x38] sm:$0xff]
    %v48 = vcombine.high %v32, %v32
    %v49 = vcombine.high %v33, %v33
    %v50 = vcombine.high %v34, %v34
    %v51 = vcombine.high %v35, %v35
    %v52 = vcombine.high %v36, %v36
    %v53 = vcombine.high %v37, %v37
    %v54 = vcombine.high %v38, %v38
    %v55 = vcombine.high %v39, %v39
    %vm64 = vcmask 1043456
    %v65 = vsel %vm64, %v32, 0.0
    %v66 = vsel %vm64, %v33, 0.0
    %v67 = vadd.f32 %v65, %v66
    %v68 = vsel %vm64, %v34, 0.0
    %v69 = vadd.f32 %v67, %v68
    %v70 = vsel %vm64, %v35, 0.0
    %v71 = vadd.f32 %v69, %v70
    %v72 = vsel %vm64, %v36, 0.0
    %v73 = vadd.f32 %v71, %v72
    %v74 = vsel %vm64, %v37, 0.0
    %v75 = vadd.f32 %v73, %v74
    %v76 = vsel %vm64, %v38, 0.0
    %v77 = vadd.f32 %v75, %v76
    %v78 = vsel %vm64, %v39, 0.0
    %v79 = vadd.f32 %v77, %v78
    %v80 = vsel %vm64, %v48, 0.0
    %v81 = vsel %vm64, %v49, 0.0
    %v82 = vadd.f32 %v80, %v81
    %v83 = vsel %vm64, %v50, 0.0
    %v84 = vadd.f32 %v82, %v83
    %v85 = vsel %vm64, %v51, 0.0
    %v86 = vadd.f32 %v84, %v85
    %v87 = vsel %vm64, %v52, 0.0
    %v88 = vadd.f32 %v86, %v87
    %v89 = vsel %vm64, %v53, 0.0
    %v90 = vadd.f32 %v88, %v89
    %v91 = vsel %vm64, %v54, 0.0
    %v92 = vadd.f32 %v90, %v91
    %v93 = vsel %vm64, %v55, 0.0
    %v94 = vadd.f32 %v92, %v93
    %v95 = vmul.f32 %v32, %v32
    %v96 = vmul.f32 %v33, %v33
    %v97 = vmul.f32 %v34, %v34
    %v98 = vmul.f32 %v35, %v35
    %v99 = vmul.f32 %v36, %v36
    %v100 = vmul.f32 %v37, %v37
    %v101 = vmul.f32 %v38, %v38
    %v102 = vmul.f32 %v39, %v39
    %v111 = vcombine.high %v95, %v95
    %v112 = vcombine.high %v96, %v96
    %v113 = vcombine.high %v97, %v97
    %v114 = vcombine.high %v98, %v98
    %v115 = vcombine.high %v99, %v99
    %v116 = vcombine.high %v100, %v100
    %v117 = vcombine.high %v101, %v101
    %v118 = vcombine.high %v102, %v102
    %v127 = vsel %vm64, %v95, 0.0
    %v128 = vsel %vm64, %v96, 0.0
    %v129 = vadd.f32 %v127, %v128
    %v130 = vsel %vm64, %v97, 0.0
    %v131 = vadd.f32 %v129, %v130
    %v132 = vsel %vm64, %v98, 0.0
    %v133 = vadd.f32 %v131, %v132
    %v134 = vsel %vm64, %v99, 0.0
    %v135 = vadd.f32 %v133, %v134
    %v136 = vsel %vm64, %v100, 0.0
    %v137 = vadd.f32 %v135, %v136
    %v138 = vsel %vm64, %v101, 0.0
    %v139 = vadd.f32 %v137, %v138
    %v140 = vsel %vm64, %v102, 0.0
    %v141 = vadd.f32 %v139, %v140
    %v142 = vsel %vm64, %v111, 0.0
    %v143 = vsel %vm64, %v112, 0.0
    %v144 = vadd.f32 %v142, %v143
    %v145 = vsel %vm64, %v113, 0.0
    %v146 = vadd.f32 %v144, %v145
    %v147 = vsel %vm64, %v114, 0.0
    %v148 = vadd.f32 %v146, %v147
    %v149 = vsel %vm64, %v115, 0.0
    %v150 = vadd.f32 %v148, %v149
    %v151 = vsel %vm64, %v116, 0.0
    %v152 = vadd.f32 %v150, %v151
    %v153 = vsel %vm64, %v117, 0.0
    %v154 = vadd.f32 %v152, %v153
    %v155 = vsel %vm64, %v118, 0.0
    %v156 = vadd.f32 %v154, %v155
    %v157 = vsel %vm64, %v79, 0.0
    %v158 = vsel %vm64, %v94, 0.0
    %v159 = vadd.f32 %v157, %v158
    %160 = vadd.xlane.f32.xlu0 %v159
    %v161 = vpop.xlane.xlu0 %160
    %v162 = vmul.f32 %v161, 0.00048828125
    %v163 = vsel %vm64, %v141, 0.0
    %v164 = vsel %vm64, %v156, 0.0
    %v165 = vadd.f32 %v163, %v164
    %166 = vadd.xlane.f32.xlu0 %v165
    %v167 = vpop.xlane.xlu0 %166
    %v168 = vmul.f32 %v167, 0.00048828125
    %v169 = vmul.f32 %v162, %v162
    %v170 = vsub.f32 %v168, %v169
    %v171 = vmax.f32 %v170, 0.0
    %v172 = vadd.f32 %v171, 1e-05
    %v173 = vrsqrt.pop %v172
    %v174 = vld [vmem:[%s1] sm:$0xf]
    %v175 = vmul.f32 %v174, %v173
    %v176 = vld [vmem:[%s2] sm:$0xf]
    %v177 = vmul.f32 %v175, %v162
    %v178 = vsub.f32 %v176, %v177
    %v179 = vld [vmem:[%s3] sm:$0xf]
    %v180 = vld [vmem:[%s3 + $0x4] sm:$0xf]
    %v181 = vld [vmem:[%s3 + $0x8] sm:$0xf]
    %v182 = vld [vmem:[%s3 + $0xc] sm:$0xf]
    %v183 = vld [vmem:[%s3 + $0x10] sm:$0xf]
    %v184 = vld [vmem:[%s3 + $0x14] sm:$0xf]
    %v185 = vld [vmem:[%s3 + $0x18] sm:$0xf]
    %v186 = vld [vmem:[%s3 + $0x1c] sm:$0xf]
    %v187 = vmul.f32 %v175, %v179
    %v188 = vmul.f32 %v175, %v180
    %v189 = vmul.f32 %v175, %v181
    %v190 = vmul.f32 %v175, %v182
    %v191 = vmul.f32 %v175, %v183
    %v192 = vmul.f32 %v175, %v184
    %v193 = vmul.f32 %v175, %v185
    %v194 = vmul.f32 %v175, %v186
    %196 = vset.pattern.permute.xlu0 0
    %197 = vperm.xlu0 %196, %v187
    %v198 = vpop.permute.xlu0 %197
    %200 = vset.pattern.permute.xlu0 0
    %201 = vperm.xlu0 %200, %v188
    %v202 = vpop.permute.xlu0 %201
    %204 = vset.pattern.permute.xlu0 0
    %205 = vperm.xlu0 %204, %v189
    %v206 = vpop.permute.xlu0 %205
    %208 = vset.pattern.permute.xlu0 0
    %209 = vperm.xlu0 %208, %v190
    %v210 = vpop.permute.xlu0 %209
    %212 = vset.pattern.permute.xlu0 0
    %213 = vperm.xlu0 %212, %v191
    %v214 = vpop.permute.xlu0 %213
    %216 = vset.pattern.permute.xlu0 0
    %217 = vperm.xlu0 %216, %v192
    %v218 = vpop.permute.xlu0 %217
    %220 = vset.pattern.permute.xlu0 0
    %221 = vperm.xlu0 %220, %v193
    %v222 = vpop.permute.xlu0 %221
    %224 = vset.pattern.permute.xlu0 0
    %225 = vperm.xlu0 %224, %v194
    %v226 = vpop.permute.xlu0 %225
    %v228 = vunpack.c.l.s4 839922192
    %v229 = vunpack.c.0.s8 %v228
    %v230 = vlaneseq
    %v231 = vshrl.u32 %v230, 7
    %v232 = vsub.s32 %v229, %v231
    %v233 = vrot.slane %v198, %v232
    %v235 = vunpack.c.l.s4 839922192
    %v236 = vunpack.c.0.s8 %v235
    %v237 = vlaneseq
    %v238 = vshrl.u32 %v237, 7
    %v239 = vsub.s32 %v236, %v238
    %v240 = vrot.slane %v202, %v239
    %v242 = vunpack.c.l.s4 839922192
    %v243 = vunpack.c.0.s8 %v242
    %v244 = vlaneseq
    %v245 = vshrl.u32 %v244, 7
    %v246 = vsub.s32 %v243, %v245
    %v247 = vrot.slane %v206, %v246
    %v249 = vunpack.c.l.s4 839922192
    %v250 = vunpack.c.0.s8 %v249
    %v251 = vlaneseq
    %v252 = vshrl.u32 %v251, 7
    %v253 = vsub.s32 %v250, %v252
    %v254 = vrot.slane %v210, %v253
    %v256 = vunpack.c.l.s4 839922192
    %v257 = vunpack.c.0.s8 %v256
    %v258 = vlaneseq
    %v259 = vshrl.u32 %v258, 7
    %v260 = vsub.s32 %v257, %v259
    %v261 = vrot.slane %v214, %v260
    %v263 = vunpack.c.l.s4 839922192
    %v264 = vunpack.c.0.s8 %v263
    %v265 = vlaneseq
    %v266 = vshrl.u32 %v265, 7
    %v267 = vsub.s32 %v264, %v266
    %v268 = vrot.slane %v218, %v267
    %v270 = vunpack.c.l.s4 839922192
    %v271 = vunpack.c.0.s8 %v270
    %v272 = vlaneseq
    %v273 = vshrl.u32 %v272, 7
    %v274 = vsub.s32 %v271, %v273
    %v275 = vrot.slane %v222, %v274
    %v277 = vunpack.c.l.s4 839922192
    %v278 = vunpack.c.0.s8 %v277
    %v279 = vlaneseq
    %v280 = vshrl.u32 %v279, 7
    %v281 = vsub.s32 %v278, %v280
    %v282 = vrot.slane %v226, %v281
    %v291 = vmul.f32 %v32, %v233
    %v292 = vmul.f32 %v33, %v240
    %v293 = vmul.f32 %v34, %v247
    %v294 = vmul.f32 %v35, %v254
    %v295 = vmul.f32 %v36, %v261
    %v296 = vmul.f32 %v37, %v268
    %v297 = vmul.f32 %v38, %v275
    %v298 = vmul.f32 %v39, %v282
    %v299 = vmul.f32 %v178, %v179
    %v300 = vmul.f32 %v178, %v180
    %v301 = vmul.f32 %v178, %v181
    %v302 = vmul.f32 %v178, %v182
    %v303 = vmul.f32 %v178, %v183
    %v304 = vmul.f32 %v178, %v184
    %v305 = vmul.f32 %v178, %v185
    %v306 = vmul.f32 %v178, %v186
    %308 = vset.pattern.permute.xlu0 0
    %309 = vperm.xlu0 %308, %v299
    %v310 = vpop.permute.xlu0 %309
    %312 = vset.pattern.permute.xlu0 0
    %313 = vperm.xlu0 %312, %v300
    %v314 = vpop.permute.xlu0 %313
    %316 = vset.pattern.permute.xlu0 0
    %317 = vperm.xlu0 %316, %v301
    %v318 = vpop.permute.xlu0 %317
    %320 = vset.pattern.permute.xlu0 0
    %321 = vperm.xlu0 %320, %v302
    %v322 = vpop.permute.xlu0 %321
    %324 = vset.pattern.permute.xlu0 0
    %325 = vperm.xlu0 %324, %v303
    %v326 = vpop.permute.xlu0 %325
    %328 = vset.pattern.permute.xlu0 0
    %329 = vperm.xlu0 %328, %v304
    %v330 = vpop.permute.xlu0 %329
    %332 = vset.pattern.permute.xlu0 0
    %333 = vperm.xlu0 %332, %v305
    %v334 = vpop.permute.xlu0 %333
    %336 = vset.pattern.permute.xlu0 0
    %337 = vperm.xlu0 %336, %v306
    %v338 = vpop.permute.xlu0 %337
    %v340 = vunpack.c.l.s4 839922192
    %v341 = vunpack.c.0.s8 %v340
    %v342 = vlaneseq
    %v343 = vshrl.u32 %v342, 7
    %v344 = vsub.s32 %v341, %v343
    %v345 = vrot.slane %v310, %v344
    %v347 = vunpack.c.l.s4 839922192
    %v348 = vunpack.c.0.s8 %v347
    %v349 = vlaneseq
    %v350 = vshrl.u32 %v349, 7
    %v351 = vsub.s32 %v348, %v350
    %v352 = vrot.slane %v314, %v351
    %v354 = vunpack.c.l.s4 839922192
    %v355 = vunpack.c.0.s8 %v354
    %v356 = vlaneseq
    %v357 = vshrl.u32 %v356, 7
    %v358 = vsub.s32 %v355, %v357
    %v359 = vrot.slane %v318, %v358
    %v361 = vunpack.c.l.s4 839922192
    %v362 = vunpack.c.0.s8 %v361
    %v363 = vlaneseq
    %v364 = vshrl.u32 %v363, 7
    %v365 = vsub.s32 %v362, %v364
    %v366 = vrot.slane %v322, %v365
    %v368 = vunpack.c.l.s4 839922192
    %v369 = vunpack.c.0.s8 %v368
    %v370 = vlaneseq
    %v371 = vshrl.u32 %v370, 7
    %v372 = vsub.s32 %v369, %v371
    %v373 = vrot.slane %v326, %v372
    %v375 = vunpack.c.l.s4 839922192
    %v376 = vunpack.c.0.s8 %v375
    %v377 = vlaneseq
    %v378 = vshrl.u32 %v377, 7
    %v379 = vsub.s32 %v376, %v378
    %v380 = vrot.slane %v330, %v379
    %v382 = vunpack.c.l.s4 839922192
    %v383 = vunpack.c.0.s8 %v382
    %v384 = vlaneseq
    %v385 = vshrl.u32 %v384, 7
    %v386 = vsub.s32 %v383, %v385
    %v387 = vrot.slane %v334, %v386
    %v389 = vunpack.c.l.s4 839922192
    %v390 = vunpack.c.0.s8 %v389
    %v391 = vlaneseq
    %v392 = vshrl.u32 %v391, 7
    %v393 = vsub.s32 %v390, %v392
    %v394 = vrot.slane %v338, %v393
    %v403 = vadd.f32 %v291, %v345
    %v404 = vadd.f32 %v292, %v352
    %v405 = vadd.f32 %v293, %v359
    %v406 = vadd.f32 %v294, %v366
    %v407 = vadd.f32 %v295, %v373
    %v408 = vadd.f32 %v296, %v380
    %v409 = vadd.f32 %v297, %v387
    %v410 = vadd.f32 %v298, %v394
    %411 = vst [vmem:[#allocation5] sm:$0xff] %v403
    %412 = vst [vmem:[#allocation5 + $0x8] sm:$0xff] %v404
    %413 = vst [vmem:[#allocation5 + $0x10] sm:$0xff] %v405
    %414 = vst [vmem:[#allocation5 + $0x18] sm:$0xff] %v406
    %415 = vst [vmem:[#allocation5 + $0x20] sm:$0xff] %v407
    %416 = vst [vmem:[#allocation5 + $0x28] sm:$0xff] %v408
    %417 = vst [vmem:[#allocation5 + $0x30] sm:$0xff] %v409
    %418 = vst [vmem:[#allocation5 + $0x38] sm:$0xff] %v410
    // Predicated region
    $region22: #{tpu_custom_call.1} parent=1 // pred_check
      _
    $region23: #{tpu_custom_call.1} parent=1 // pred_check_branch
      %420 = sbr.rel (0) target = $region25
    $region24: #{tpu_custom_call.1} parent=1 // pred_region
      %s422 = ssub.s32 1024, 1024
      %423 = vsyncadd [#allocation4], %s422
      %s424 = sshll.u32 [#allocation5], 4
      %s425 = int_to_ptr.vmem [resolvable:$true] %s424
      %430 = dma.vmem_to_hbm [thread:$0]  %s425, 1024, %s4, [#allocation4], 128, 128, 8
    $region25: #{tpu_custom_call.1} parent=1 // pred_fallthru
      _
    // Predicated region
    $region26: #{tpu_custom_call.1} parent=1 // pred_check
      _
    $region27: #{tpu_custom_call.1} parent=1 // pred_check_branch
      %432 = sbr.rel (0) target = $region29
    $region28: #{tpu_custom_call.1} parent=1 // pred_region
      %433 = dma.done [#allocation4], 1024
    $region29: #{tpu_custom_call.1} parent=1 // pred_fallthru
      _
    %434 = vsyncpa [#allocation3], 1
    %435 = vsyncpa [#allocation4], 1

</llo_original>
